<compile_context>
chip_gen: v6e
topology: v6e:2x2x1
jax: 0.10.0
libtpu: 0.0.40
codegen_flags: <defaults>
</compile_context>

<pallas_src>
import jax
import jax.numpy as jnp
from jax.experimental import pallas as pl
from jax.experimental.pallas import tpu as pltpu


_DEFAULT_MAX_BLOCK_BYTES = 4 * 1024 * 1024  # per-input block budget (v7x-safe)


# --------------------------------------------------------------------------
# tile picking
# --------------------------------------------------------------------------
def _pick_row_tile(n_rows, bytes_per_row, max_block_bytes):
    """Largest multiple-of-8 row tile that divides n_rows and fits the budget."""
    if n_rows <= 8:
        return n_rows
    limit = max_block_bytes // max(bytes_per_row, 1)
    limit = min(limit, n_rows)
    limit = (limit // 8) * 8
    if limit < 8:
        return 8 if n_rows % 8 == 0 else n_rows
    for t in range(limit, 7, -8):
        if n_rows % t == 0:
            return t
    return n_rows  # no multiple-of-8 divisor; fall back to whole extent


# --------------------------------------------------------------------------
# cross-entropy (sum over rows; mean taken in the wrapper)
# --------------------------------------------------------------------------
def _ce_kernel(logits_ref, target_ref, out_ref, acc_ref):
    i = pl.program_id(1)  # reduction axis

    @pl.when(i == 0)
    def _():
        acc_ref[...] = jnp.zeros_like(acc_ref)

    logits = logits_ref[...].astype(jnp.float32)   # (tm, C), f32 math in-kernel
    tgt = target_ref[...]                          # (tm, 1) int32
    tm, c = logits.shape

    row_max = jnp.max(logits, axis=-1, keepdims=True)
    shifted = logits - row_max                     # (tm, C)
    col = jax.lax.broadcasted_iota(jnp.int32, (tm, c), 1)
    onehot = (col == tgt).astype(jnp.float32)
    picked = jnp.sum(shifted * onehot, axis=-1, keepdims=True)   # (tm, 1)
    lse = jnp.log(jnp.sum(jnp.exp(shifted), axis=-1, keepdims=True))  # (tm, 1)

    # defer the scalar collapse: per-row losses accumulate on the VPU
    acc_ref[...] += lse - picked

    @pl.when(i == pl.num_programs(1) - 1)
    def _():
        total = jnp.sum(acc_ref[...])
        out_ref[...] = jnp.zeros(out_ref.shape, jnp.float32) + total


def _ce_sum(logits, target2d, *, max_block_bytes):
    n, c = logits.shape
    # logits row + (lane-padded) target row per sample
    bytes_per_row = c * logits.dtype.itemsize + 128 * 4
    tm = _pick_row_tile(n, bytes_per_row, max_block_bytes)
    num_tiles = n // tm
    n_par = 2 if (num_tiles >= 2 and num_tiles % 2 == 0) else 1
    tiles_per_split = num_tiles // n_par

    out = pl.pallas_call(
        _ce_kernel,
        out_shape=jax.ShapeDtypeStruct((n_par, 8, 128), jnp.float32),
        grid_spec=pltpu.PrefetchScalarGridSpec(
            num_scalar_prefetch=0,
            grid=(n_par, tiles_per_split),
            in_specs=[
                pl.BlockSpec((tm, c), lambda p, i: (p * tiles_per_split + i, 0)),
                pl.BlockSpec((tm, 1), lambda p, i: (p * tiles_per_split + i, 0)),
            ],
            out_specs=pl.BlockSpec((1, 8, 128), lambda p, i: (p, 0, 0)),
            scratch_shapes=[pltpu.VMEM((tm, 1), jnp.float32)],
        ),
        compiler_params=pltpu.CompilerParams(
            dimension_semantics=("parallel", "arbitrary")),
        cost_estimate=pl.CostEstimate(
            flops=5 * n * c,
            transcendentals=n * c + n,
            bytes_accessed=n * c * logits.dtype.itemsize + n * 4
            + n_par * 8 * 128 * 4),
    )(logits, target2d)
    return jnp.sum(out[:, 0, 0])


# --------------------------------------------------------------------------
# L1 / L2 sums over a parameter tensor (read in place, no concat/pad copy)
# --------------------------------------------------------------------------
def _reg_kernel(x_ref, out_ref, l1_acc, l2_acc):
    i = pl.program_id(0)

    @pl.when(i == 0)
    def _():
        l1_acc[...] = jnp.zeros_like(l1_acc)
        l2_acc[...] = jnp.zeros_like(l2_acc)

    x = x_ref[...].astype(jnp.float32)
    l1_acc[...] += jnp.sum(jnp.abs(x), axis=0, keepdims=True)
    l2_acc[...] += jnp.sum(x * x, axis=0, keepdims=True)

    @pl.when(i == pl.num_programs(0) - 1)
    def _():
        out_ref[...] = jnp.zeros(out_ref.shape, jnp.float32)
        out_ref[0, 0] = jnp.sum(l1_acc[...])
        out_ref[0, 1] = jnp.sum(l2_acc[...])


def _param_reg_sums(p, *, max_block_bytes):
    size = p.size
    # Contiguous reshape only (no copy): lane-dense (R, 128) when possible,
    # else a single (1, size) row (small odd-sized params like biases).
    if size % 128 == 0:
        x2d = p.reshape(size // 128, 128)
    else:
        # TODO(synk): very large params whose size is not a multiple of 128
        # land in a single (1, size) block; factor into (r, c) if that matters.
        x2d = p.reshape(1, size)
    r, cc = x2d.shape
    tile = _pick_row_tile(r, cc * x2d.dtype.itemsize, max_block_bytes)

    out = pl.pallas_call(
        _reg_kernel,
        out_shape=jax.ShapeDtypeStruct((8, 128), jnp.float32),
        grid_spec=pltpu.PrefetchScalarGridSpec(
            num_scalar_prefetch=0,
            grid=(r // tile,),
            in_specs=[pl.BlockSpec((tile, cc), lambda i: (i, 0))],
            out_specs=pl.BlockSpec((8, 128), lambda i: (0, 0)),
            scratch_shapes=[pltpu.VMEM((1, cc), jnp.float32),
                            pltpu.VMEM((1, cc), jnp.float32)],
        ),
        compiler_params=pltpu.CompilerParams(
            dimension_semantics=("arbitrary",)),
        cost_estimate=pl.CostEstimate(
            flops=3 * size,
            transcendentals=0,
            bytes_accessed=size * p.dtype.itemsize + 8 * 128 * 4),
    )(x2d)
    return out[0, 0], out[0, 1]


# --------------------------------------------------------------------------
# wrapper: total_loss = CE_mean + lambda_l1 * sum|w| + lambda_l2 * sum w^2
# --------------------------------------------------------------------------
def custom_loss(logits, target, param_list, lambda_l1, lambda_l2,
                *, max_block_bytes=_DEFAULT_MAX_BLOCK_BYTES):
    """logits: (N, C) float; target: (N,) int; param_list: list of arrays."""
    n, _ = logits.shape
    target2d = target.astype(jnp.int32).reshape(n, 1)

    ce_total = _ce_sum(logits, target2d, max_block_bytes=max_block_bytes)

    l1_total = jnp.float32(0.0)
    l2_total = jnp.float32(0.0)
    for p in param_list:
        l1, l2 = _param_reg_sums(p, max_block_bytes=max_block_bytes)
        l1_total = l1_total + l1
        l2_total = l2_total + l2

    # lambdas / 1/N applied here -> kernels never recompile on hyperparam sweeps
    return ce_total / jnp.float32(n) + lambda_l1 * l1_total + lambda_l2 * l2_total


# --------------------------------------------------------------------------
# reference + tests
# --------------------------------------------------------------------------
def _reference(logits, target, params, lambda_l1, lambda_l2):
    logp = jax.nn.log_softmax(logits.astype(jnp.float32), axis=-1)
    ce = -jnp.mean(logp[jnp.arange(logits.shape[0]), target])
    flat = jnp.concatenate([p.reshape(-1).astype(jnp.float32) for p in params])
    return ce + lambda_l1 * jnp.sum(jnp.abs(flat)) + lambda_l2 * jnp.sum(flat ** 2)


if __name__ == "__main__":
    key = jax.random.PRNGKey(0)
    lambda_l1, lambda_l2 = 0.01, 0.001

    # ---- case 1: toy shapes (single tile per stream) ----------------------
    k1, k2, k3, k4, key = jax.random.split(key, 5)
    N, C, D = 64, 32, 16
    logits = jax.random.normal(k1, (N, C), dtype=jnp.float32)
    target = jax.random.randint(k2, (N,), 0, C)
    weight = jax.random.normal(k3, (C, D), dtype=jnp.float32) * 0.1
    bias = jax.random.normal(k4, (C,), dtype=jnp.float32) * 0.1
    params = [weight, bias]

    loss = jax.block_until_ready(
        custom_loss(logits, target, params, lambda_l1, lambda_l2))
    ref = _reference(logits, target, params, lambda_l1, lambda_l2)
    assert jnp.allclose(loss, ref, rtol=1e-4, atol=1e-4), (loss, ref)

    # ---- case 2: force multi-tile + 2-way parallel split (small budget) ---
    k1, k2, k3, k4, key = jax.random.split(key, 5)
    N2, C2, D2 = 1024, 128, 96
    logits2 = jax.random.normal(k1, (N2, C2), dtype=jnp.float32)
    target2 = jax.random.randint(k2, (N2,), 0, C2)
    weight2 = jax.random.normal(k3, (C2, D2), dtype=jnp.float32) * 0.1
    bias2 = jax.random.normal(k4, (D2,), dtype=jnp.float32) * 0.1
    params2 = [weight2, bias2]

    loss2 = jax.block_until_ready(
        custom_loss(logits2, target2, params2, lambda_l1, lambda_l2,
                    max_block_bytes=32 * 1024))
    ref2 = _reference(logits2, target2, params2, lambda_l1, lambda_l2)
    assert jnp.allclose(loss2, ref2, rtol=1e-4, atol=1e-4), (loss2, ref2)

    print("KERNEL_OK")
</pallas_src>

<mosaic_0001>
module attributes {stable_mosaic.version = 11 : i64} {
  func.func @_ce_kernel(%arg0: i32, %arg1: i32, %arg2: memref<64x32xf32, #tpu.memory_space<vmem>>, %arg3: memref<64x1xi32, #tpu.memory_space<vmem>>, %arg4: memref<1x8x128xf32, #tpu.memory_space<vmem>>, %arg5: memref<64x1xf32, #tpu.memory_space<vmem>>) attributes {dimension_semantics = [#tpu.dimension_semantics<parallel>, #tpu.dimension_semantics<arbitrary>], iteration_bounds = array<i64: 1, 1>, scalar_prefetch = 0 : i64, scratch_operands = 1 : i64, tpu.core_type = #tpu.core_type<tc>, window_params = [{transform_indices = @transform_0, window_bounds = array<i64: 64, 32>}, {transform_indices = @transform_1, window_bounds = array<i64: 64, 1>}, {transform_indices = @transform_2, window_bounds = array<i64: 1, 8, 128>}]} {
    %c0_i32 = arith.constant 0 : i32
    %0 = arith.cmpi eq, %arg1, %c0_i32 : i32
    %1 = arith.extui %0 : i1 to i32
    %c0_i32_0 = arith.constant 0 : i32
    %2 = arith.cmpi ne, %1, %c0_i32_0 : i32
    scf.if %2 {
      %cst_12 = arith.constant 0.000000e+00 : f32
      %28 = vector.broadcast %cst_12 : f32 to vector<64x1xf32>
      %c0_13 = arith.constant 0 : index
      %c0_14 = arith.constant 0 : index
      %29 = vector.load %arg5[%c0_13, %c0_14] : memref<64x1xf32, #tpu.memory_space<vmem>>, vector<64x1xf32>
      tpu.vector_store %arg5[%c0_13, %c0_14], %28 {strides = array<i32>} : memref<64x1xf32, #tpu.memory_space<vmem>>, vector<64x1xf32>,
    } else {
    }
    %c0 = arith.constant 0 : index
    %c0_1 = arith.constant 0 : index
    %3 = vector.load %arg2[%c0, %c0_1] : memref<64x32xf32, #tpu.memory_space<vmem>>, vector<64x32xf32>
    %c0_2 = arith.constant 0 : index
    %c0_3 = arith.constant 0 : index
    %4 = vector.load %arg3[%c0_2, %c0_3] : memref<64x1xi32, #tpu.memory_space<vmem>>, vector<64x1xi32>
    %cst = arith.constant dense<0xFF800000> : vector<64xf32>
    %5 = vector.multi_reduction <maximumf>, %3, %cst [1] : vector<64x32xf32> to vector<64xf32>
    %6 = vector.shape_cast %5 : vector<64xf32> to vector<64x1xf32>
    %7 = vector.broadcast %6 : vector<64x1xf32> to vector<64x32xf32>
    %8 = arith.subf %3, %7 : vector<64x32xf32>
    %9 = tpu.iota {dimensions = array<i32: 1>} : vector<64x32xi32>
    %10 = vector.broadcast %4 : vector<64x1xi32> to vector<64x32xi32>
    %11 = arith.cmpi eq, %9, %10 : vector<64x32xi32>
    %12 = arith.extui %11 : vector<64x32xi1> to vector<64x32xi32>
    %13 = arith.sitofp %12 : vector<64x32xi32> to vector<64x32xf32>
    %14 = arith.mulf %8, %13 : vector<64x32xf32>
    %cst_4 = arith.constant dense<0.000000e+00> : vector<64xf32>
    %15 = vector.multi_reduction <add>, %14, %cst_4 [1] : vector<64x32xf32> to vector<64xf32>
    %16 = vector.shape_cast %15 : vector<64xf32> to vector<64x1xf32>
    %17 = math.exp %8 : vector<64x32xf32>
    %cst_5 = arith.constant dense<0.000000e+00> : vector<64xf32>
    %18 = vector.multi_reduction <add>, %17, %cst_5 [1] : vector<64x32xf32> to vector<64xf32>
    %19 = vector.shape_cast %18 : vector<64xf32> to vector<64x1xf32>
    %20 = math.log %19 : vector<64x1xf32>
    %c0_6 = arith.constant 0 : index
    %c0_7 = arith.constant 0 : index
    %21 = vector.load %arg5[%c0_6, %c0_7] : memref<64x1xf32, #tpu.memory_space<vmem>>, vector<64x1xf32>
    %22 = arith.subf %20, %16 : vector<64x1xf32>
    %23 = arith.addf %21, %22 : vector<64x1xf32>
    %c0_8 = arith.constant 0 : index
    %c0_9 = arith.constant 0 : index
    %24 = vector.load %arg5[%c0_8, %c0_9] : memref<64x1xf32, #tpu.memory_space<vmem>>, vector<64x1xf32>
    tpu.vector_store %arg5[%c0_8, %c0_9], %23 {strides = array<i32>} : memref<64x1xf32, #tpu.memory_space<vmem>>, vector<64x1xf32>,
    %c0_i32_10 = arith.constant 0 : i32
    %25 = arith.cmpi eq, %arg1, %c0_i32_10 : i32
    %26 = arith.extui %25 : i1 to i32
    %c0_i32_11 = arith.constant 0 : i32
    %27 = arith.cmpi ne, %26, %c0_i32_11 : i32
    scf.if %27 {
      %c0_12 = arith.constant 0 : index
      %c0_13 = arith.constant 0 : index
      %28 = vector.load %arg5[%c0_12, %c0_13] : memref<64x1xf32, #tpu.memory_space<vmem>>, vector<64x1xf32>
      %29 = vector.shape_cast %28 : vector<64x1xf32> to vector<1x64x1xf32>
      %cst_14 = arith.constant dense<0.000000e+00> : vector<1xf32>
      %30 = vector.multi_reduction <add>, %29, %cst_14 [1, 2] : vector<1x64x1xf32> to vector<1xf32>
      %31 = vector.shape_cast %30 : vector<1xf32> to vector<1x1x1xf32>
      %32 = vector.extract %31[0, 0, 0] : f32 from vector<1x1x1xf32>
      %cst_15 = arith.constant 0.000000e+00 : f32
      %33 = vector.broadcast %cst_15 : f32 to vector<1x8x128xf32>
      %34 = vector.broadcast %32 : f32 to vector<1x8x128xf32>
      %35 = arith.addf %33, %34 : vector<1x8x128xf32>
      %c0_16 = arith.constant 0 : index
      %c0_17 = arith.constant 0 : index
      %c0_18 = arith.constant 0 : index
      %36 = vector.load %arg4[%c0_16, %c0_17, %c0_18] : memref<1x8x128xf32, #tpu.memory_space<vmem>>, vector<1x8x128xf32>
      tpu.vector_store %arg4[%c0_16, %c0_17, %c0_18], %35 {strides = array<i32>} : memref<1x8x128xf32, #tpu.memory_space<vmem>>, vector<1x8x128xf32>,
    } else {
    }
    return
  }
  func.func @transform_0(%arg0: i32, %arg1: i32) -> (i32, i32) {
    %c1_i32 = arith.constant 1 : i32
    %0 = arith.muli %arg0, %c1_i32 : i32
    %1 = arith.addi %0, %arg1 : i32
    %c0_i32 = arith.constant 0 : i32
    %c0_i32_0 = arith.constant 0 : i32
    return %1, %c0_i32 : i32, i32
  }
  func.func @transform_1(%arg0: i32, %arg1: i32) -> (i32, i32) {
    %c1_i32 = arith.constant 1 : i32
    %0 = arith.muli %arg0, %c1_i32 : i32
    %1 = arith.addi %0, %arg1 : i32
    %c0_i32 = arith.constant 0 : i32
    %c0_i32_0 = arith.constant 0 : i32
    return %1, %c0_i32 : i32, i32
  }
  func.func @transform_2(%arg0: i32, %arg1: i32) -> (i32, i32, i32) {
    %c0_i32 = arith.constant 0 : i32
    %c0_i32_0 = arith.constant 0 : i32
    %c0_i32_1 = arith.constant 0 : i32
    return %arg0, %c0_i32, %c0_i32_0 : i32, i32, i32
  }
}

</mosaic_0001>

<llo_original>
// kernel: tpu_custom_call.1
$region0: #{tpu_custom_call.1}
  #allocation0 [shape = 'u32[]', space=smem, size = 0x4, offset = 0x4, fixed_abs, tag = 'smem constant byte address 0x4 - core index']
  #allocation1 [shape = 'u32[144,128]{1,0:T(1,128)}', space=vmem, size = 0x12000, scoped, tag = 'internal scratch']
  #allocation2 [shape = 'f32[64,1]{1,0:T(8,128)}', space=vmem, size = 0x8000, scoped, tag = 'scratch operand']
  %s0 = inlined_call_operand.vmem [shape: f32[64,32], index: 0, kind: input, shape index: {}]
  %s1 = inlined_call_operand.vmem [shape: s32[64,1], index: 1, kind: input, shape index: {}]
  %s2 = inlined_call_operand.hbm [shape: f32[1,8,128], index: 2, kind: output, shape index: {}]
  %s3 = sld [smem:[#allocation0]]
  $region26: #{tpu_custom_call.1} parent=0
    _
  %s5 = ssub.s32 1, %s3
  %s6 = scalar_select 0, %s5, %s3
  $region1: #{tpu_custom_call.1} parent=0
    #allocation3 [shape = 'u8[4096]{0}', space=vmem, size = 0x1000, scoped, tag = 'output window, operand 0, single buffered']
    #allocation4 [shape = 's32[1]{0}', space=sflag, size = 0x4, scoped, tag = 'scoped memory for tpu_custom_call.1']
    %7 = vsyncpa [#allocation4], 0
    // Predicated region
    $region2: #{tpu_custom_call.1} parent=1 // pred_check
      _
    $region3: #{tpu_custom_call.1} parent=1 // pred_check_branch
      %9 = sbr.rel (0) target = $region5
    $region4: #{tpu_custom_call.1} parent=1 // pred_region
      %s10 = sadd.s32 0, 0
      %s11 = smul.u32 8, %s10
      %p12 = scmp.lt.s32.totalorder %s11, 7
      %s13 = scalar_select %p12, %s11, 7
      %s14 = smul.addr %s13, 8
      %s15 = scalar_lea.vmem %s0, %s14
      %s16 = sadd.s32 0, 0
      %s17 = smul.u32 8, %s16
    $region5: #{tpu_custom_call.1} parent=1 // pred_fallthru
      _
    // Predicated region
    $region6: #{tpu_custom_call.1} parent=1 // pred_check
      _
    $region7: #{tpu_custom_call.1} parent=1 // pred_check_branch
      %19 = sbr.rel (0) target = $region9
    $region8: #{tpu_custom_call.1} parent=1 // pred_region
      %s20 = sadd.s32 0, 0
      %s21 = smul.u32 8, %s20
      %p22 = scmp.lt.s32.totalorder %s21, 7
      %s23 = scalar_select %p22, %s21, 7
      %s24 = smul.addr %s23, 8
      %s25 = scalar_lea.vmem %s1, %s24
      %s26 = sadd.s32 0, 0
      %s27 = smul.u32 8, %s26
    $region9: #{tpu_custom_call.1} parent=1 // pred_fallthru
      _
    %s28 = sadd.s32 0, 0
    %s29 = smul.u32 8, %s28
    %p30 = scmp.lt.s32.totalorder %s29, 7
    %s31 = scalar_select %p30, %s29, 7
    %s32 = smul.addr %s31, 8
    %s33 = scalar_lea.vmem %s0, %s32
    %s34 = sadd.s32 0, 0
    %s35 = smul.u32 8, %s34
    %p36 = scmp.lt.s32.totalorder %s35, 7
    %s37 = scalar_select %p36, %s35, 7
    %s38 = smul.addr %s37, 8
    %s39 = scalar_lea.vmem %s1, %s38
    %s40 = sadd.s32 0, 0
    %s41 = smul.u32 8, %s40
    %p42 = scmp.lt.s32.totalorder %s41, 7
    %s43 = scalar_select %p42, %s41, 7
    %s44 = smul.addr %s43, 8
    %s45 = scalar_lea.vmem %s0, %s44
    %s46 = sadd.s32 0, 0
    %s47 = smul.u32 8, %s46
    %s48 = sadd.s32 0, 0
    %s49 = smul.u32 8, %s48
    %p50 = scmp.lt.s32.totalorder %s49, 7
    %s51 = scalar_select %p50, %s49, 7
    %s52 = smul.addr %s51, 8
    %s53 = scalar_lea.vmem %s1, %s52
    %s54 = sadd.s32 0, 0
    %s55 = smul.u32 8, %s54
    %p56 = scmp.eq.s32.totalorder 0, 0
    // Predicated region
    $region10: #{tpu_custom_call.1} parent=1 // pred_check
      %p57 = pneg %p56
    $region11: #{tpu_custom_call.1} parent=1 // pred_check_branch
      %59 = sbr.rel (%p57) target = $region13
    $region12: #{tpu_custom_call.1} parent=1 // pred_region
      %vm60 = vcmask 7168
      %61 = vst.msk [vmem:[#allocation2] sm:$0xff] %vm60, 0.0
      %62 = vst.msk [vmem:[#allocation2 + $0x8] sm:$0xff] %vm60, 0.0
      %63 = vst.msk [vmem:[#allocation2 + $0x10] sm:$0xff] %vm60, 0.0
      %64 = vst.msk [vmem:[#allocation2 + $0x18] sm:$0xff] %vm60, 0.0
      %65 = vst.msk [vmem:[#allocation2 + $0x20] sm:$0xff] %vm60, 0.0
      %66 = vst.msk [vmem:[#allocation2 + $0x28] sm:$0xff] %vm60, 0.0
      %67 = vst.msk [vmem:[#allocation2 + $0x30] sm:$0xff] %vm60, 0.0
      %68 = vst.msk [vmem:[#allocation2 + $0x38] sm:$0xff] %vm60, 0.0
    $region13: #{tpu_custom_call.1} parent=1 // pred_fallthru
      _
    %v69 = vld [vmem:[%s45] sm:$0xff]
    %v70 = vld [vmem:[%s45 + $0x8] sm:$0xff]
    %v71 = vld [vmem:[%s45 + $0x10] sm:$0xff]
    %v72 = vld [vmem:[%s45 + $0x18] sm:$0xff]
    %v73 = vld [vmem:[%s45 + $0x20] sm:$0xff]
    %v74 = vld [vmem:[%s45 + $0x28] sm:$0xff]
    %v75 = vld [vmem:[%s45 + $0x30] sm:$0xff]
    %v76 = vld [vmem:[%s45 + $0x38] sm:$0xff]
    %v77 = vld [vmem:[%s53] sm:$0xff]
    %v78 = vld [vmem:[%s53 + $0x8] sm:$0xff]
    %v79 = vld [vmem:[%s53 + $0x10] sm:$0xff]
    %v80 = vld [vmem:[%s53 + $0x18] sm:$0xff]
    %v81 = vld [vmem:[%s53 + $0x20] sm:$0xff]
    %v82 = vld [vmem:[%s53 + $0x28] sm:$0xff]
    %v83 = vld [vmem:[%s53 + $0x30] sm:$0xff]
    %v84 = vld [vmem:[%s53 + $0x38] sm:$0xff]
    %vm85 = vcmask 261120
    %v86 = vsel %vm85, %v69, -inf
    %87 = vmax.xlane.f32.xlu0 %v86
    %v88 = vpop.xlane.xlu0 %87
    %v89 = vsel %vm85, %v70, -inf
    %90 = vmax.xlane.f32.xlu0 %v89
    %v91 = vpop.xlane.xlu0 %90
    %v92 = vsel %vm85, %v71, -inf
    %93 = vmax.xlane.f32.xlu0 %v92
    %v94 = vpop.xlane.xlu0 %93
    %v95 = vsel %vm85, %v72, -inf
    %96 = vmax.xlane.f32.xlu0 %v95
    %v97 = vpop.xlane.xlu0 %96
    %v98 = vsel %vm85, %v73, -inf
    %99 = vmax.xlane.f32.xlu0 %v98
    %v100 = vpop.xlane.xlu0 %99
    %v101 = vsel %vm85, %v74, -inf
    %102 = vmax.xlane.f32.xlu0 %v101
    %v103 = vpop.xlane.xlu0 %102
    %v104 = vsel %vm85, %v75, -inf
    %105 = vmax.xlane.f32.xlu0 %v104
    %v106 = vpop.xlane.xlu0 %105
    %v107 = vsel %vm85, %v76, -inf
    %108 = vmax.xlane.f32.xlu0 %v107
    %v109 = vpop.xlane.xlu0 %108
    %v110 = vsub.f32 %v69, %v88
    %v111 = vsub.f32 %v70, %v91
    %v112 = vsub.f32 %v71, %v94
    %v113 = vsub.f32 %v72, %v97
    %v114 = vsub.f32 %v73, %v100
    %v115 = vsub.f32 %v74, %v103
    %v116 = vsub.f32 %v75, %v106
    %v117 = vsub.f32 %v76, %v109
    %v118 = vlaneseq
    %v119 = vand.u32 %v118, 127
    %120 = vset.pattern.permute.xlu0 0
    %121 = vperm.xlu0 %120, %v77
    %v122 = vpop.permute.xlu0 %121
    %123 = vset.pattern.permute.xlu0 0
    %124 = vperm.xlu0 %123, %v78
    %v125 = vpop.permute.xlu0 %124
    %126 = vset.pattern.permute.xlu0 0
    %127 = vperm.xlu0 %126, %v79
    %v128 = vpop.permute.xlu0 %127
    %129 = vset.pattern.permute.xlu0 0
    %130 = vperm.xlu0 %129, %v80
    %v131 = vpop.permute.xlu0 %130
    %132 = vset.pattern.permute.xlu0 0
    %133 = vperm.xlu0 %132, %v81
    %v134 = vpop.permute.xlu0 %133
    %135 = vset.pattern.permute.xlu0 0
    %136 = vperm.xlu0 %135, %v82
    %v137 = vpop.permute.xlu0 %136
    %138 = vset.pattern.permute.xlu0 0
    %139 = vperm.xlu0 %138, %v83
    %v140 = vpop.permute.xlu0 %139
    %141 = vset.pattern.permute.xlu0 0
    %142 = vperm.xlu0 %141, %v84
    %v143 = vpop.permute.xlu0 %142
    %vm144 = vcmp.eq.s32.totalorder %v119, %v122
    %vm145 = vcmp.eq.s32.totalorder %v119, %v125
    %vm146 = vcmp.eq.s32.totalorder %v119, %v128
    %vm147 = vcmp.eq.s32.totalorder %v119, %v131
    %vm148 = vcmp.eq.s32.totalorder %v119, %v134
    %vm149 = vcmp.eq.s32.totalorder %v119, %v137
    %vm150 = vcmp.eq.s32.totalorder %v119, %v140
    %vm151 = vcmp.eq.s32.totalorder %v119, %v143
    %v152 = vsel %vm144, 1, 0
    %v153 = vsel %vm145, 1, 0
    %v154 = vsel %vm146, 1, 0
    %v155 = vsel %vm147, 1, 0
    %v156 = vsel %vm148, 1, 0
    %v157 = vsel %vm149, 1, 0
    %v158 = vsel %vm150, 1, 0
    %v159 = vsel %vm151, 1, 0
    %v160 = vcvt.s32.f32 %v152
    %v161 = vcvt.s32.f32 %v153
    %v162 = vcvt.s32.f32 %v154
    %v163 = vcvt.s32.f32 %v155
    %v164 = vcvt.s32.f32 %v156
    %v165 = vcvt.s32.f32 %v157
    %v166 = vcvt.s32.f32 %v158
    %v167 = vcvt.s32.f32 %v159
    %v168 = vmul.f32 %v110, %v160
    %v169 = vmul.f32 %v111, %v161
    %v170 = vmul.f32 %v112, %v162
    %v171 = vmul.f32 %v113, %v163
    %v172 = vmul.f32 %v114, %v164
    %v173 = vmul.f32 %v115, %v165
    %v174 = vmul.f32 %v116, %v166
    %v175 = vmul.f32 %v117, %v167
    %v176 = vsel %vm85, %v168, 0.0
    %177 = vadd.xlane.f32.xlu0 %v176
    %v178 = vpop.xlane.xlu0 %177
    %v179 = vsel %vm85, %v169, 0.0
    %180 = vadd.xlane.f32.xlu0 %v179
    %v181 = vpop.xlane.xlu0 %180
    %v182 = vsel %vm85, %v170, 0.0
    %183 = vadd.xlane.f32.xlu0 %v182
    %v184 = vpop.xlane.xlu0 %183
    %v185 = vsel %vm85, %v171, 0.0
    %186 = vadd.xlane.f32.xlu0 %v185
    %v187 = vpop.xlane.xlu0 %186
    %v188 = vsel %vm85, %v172, 0.0
    %189 = vadd.xlane.f32.xlu0 %v188
    %v190 = vpop.xlane.xlu0 %189
    %v191 = vsel %vm85, %v173, 0.0
    %192 = vadd.xlane.f32.xlu0 %v191
    %v193 = vpop.xlane.xlu0 %192
    %v194 = vsel %vm85, %v174, 0.0
    %195 = vadd.xlane.f32.xlu0 %v194
    %v196 = vpop.xlane.xlu0 %195
    %v197 = vsel %vm85, %v175, 0.0
    %198 = vadd.xlane.f32.xlu0 %v197
    %v199 = vpop.xlane.xlu0 %198
    %v200 = vmul.f32 %v110, 1.442695
    %v201 = vpow.pop %v200
    %v202 = vmul.f32 %v111, 1.442695
    %v203 = vpow.pop %v202
    %v204 = vmul.f32 %v112, 1.442695
    %v205 = vpow.pop %v204
    %v206 = vmul.f32 %v113, 1.442695
    %v207 = vpow.pop %v206
    %v208 = vmul.f32 %v114, 1.442695
    %v209 = vpow.pop %v208
    %v210 = vmul.f32 %v115, 1.442695
    %v211 = vpow.pop %v210
    %v212 = vmul.f32 %v116, 1.442695
    %v213 = vpow.pop %v212
    %v214 = vmul.f32 %v117, 1.442695
    %v215 = vpow.pop %v214
    %v216 = vsel %vm85, %v201, 0.0
    %217 = vadd.xlane.f32.xlu0 %v216
    %v218 = vpop.xlane.xlu0 %217
    %v219 = vsel %vm85, %v203, 0.0
    %220 = vadd.xlane.f32.xlu0 %v219
    %v221 = vpop.xlane.xlu0 %220
    %v222 = vsel %vm85, %v205, 0.0
    %223 = vadd.xlane.f32.xlu0 %v222
    %v224 = vpop.xlane.xlu0 %223
    %v225 = vsel %vm85, %v207, 0.0
    %226 = vadd.xlane.f32.xlu0 %v225
    %v227 = vpop.xlane.xlu0 %226
    %v228 = vsel %vm85, %v209, 0.0
    %229 = vadd.xlane.f32.xlu0 %v228
    %v230 = vpop.xlane.xlu0 %229
    %v231 = vsel %vm85, %v211, 0.0
    %232 = vadd.xlane.f32.xlu0 %v231
    %v233 = vpop.xlane.xlu0 %232
    %v234 = vsel %vm85, %v213, 0.0
    %235 = vadd.xlane.f32.xlu0 %v234
    %v236 = vpop.xlane.xlu0 %235
    %v237 = vsel %vm85, %v215, 0.0
    %238 = vadd.xlane.f32.xlu0 %v237
    %v239 = vpop.xlane.xlu0 %238
    %v240 = vlog2.pop %v218
    %v241 = vmul.f32 %v240, 0.6931472
    %v242 = vlog2.pop %v221
    %v243 = vmul.f32 %v242, 0.6931472
    %v244 = vlog2.pop %v224
    %v245 = vmul.f32 %v244, 0.6931472
    %v246 = vlog2.pop %v227
    %v247 = vmul.f32 %v246, 0.6931472
    %v248 = vlog2.pop %v230
    %v249 = vmul.f32 %v248, 0.6931472
    %v250 = vlog2.pop %v233
    %v251 = vmul.f32 %v250, 0.6931472
    %v252 = vlog2.pop %v236
    %v253 = vmul.f32 %v252, 0.6931472
    %v254 = vlog2.pop %v239
    %v255 = vmul.f32 %v254, 0.6931472
    %v256 = vld [vmem:[#allocation2] sm:$0xff]
    %v257 = vld [vmem:[#allocation2 + $0x8] sm:$0xff]
    %v258 = vld [vmem:[#allocation2 + $0x10] sm:$0xff]
    %v259 = vld [vmem:[#allocation2 + $0x18] sm:$0xff]
    %v260 = vld [vmem:[#allocation2 + $0x20] sm:$0xff]
    %v261 = vld [vmem:[#allocation2 + $0x28] sm:$0xff]
    %v262 = vld [vmem:[#allocation2 + $0x30] sm:$0xff]
    %v263 = vld [vmem:[#allocation2 + $0x38] sm:$0xff]
    %v264 = vsub.f32 %v241, %v178
    %v265 = vsub.f32 %v243, %v181
    %v266 = vsub.f32 %v245, %v184
    %v267 = vsub.f32 %v247, %v187
    %v268 = vsub.f32 %v249, %v190
    %v269 = vsub.f32 %v251, %v193
    %v270 = vsub.f32 %v253, %v196
    %v271 = vsub.f32 %v255, %v199
    %v272 = vadd.f32 %v256, %v264
    %v273 = vadd.f32 %v257, %v265
    %v274 = vadd.f32 %v258, %v266
    %v275 = vadd.f32 %v259, %v267
    %v276 = vadd.f32 %v260, %v268
    %v277 = vadd.f32 %v261, %v269
    %v278 = vadd.f32 %v262, %v270
    %v279 = vadd.f32 %v263, %v271
    %vm280 = vcmask 7168
    %281 = vst.msk [vmem:[#allocation2] sm:$0xff] %vm280, %v272
    %282 = vst.msk [vmem:[#allocation2 + $0x8] sm:$0xff] %vm280, %v273
    %283 = vst.msk [vmem:[#allocation2 + $0x10] sm:$0xff] %vm280, %v274
    %284 = vst.msk [vmem:[#allocation2 + $0x18] sm:$0xff] %vm280, %v275
    %285 = vst.msk [vmem:[#allocation2 + $0x20] sm:$0xff] %vm280, %v276
    %286 = vst.msk [vmem:[#allocation2 + $0x28] sm:$0xff] %vm280, %v277
    %287 = vst.msk [vmem:[#allocation2 + $0x30] sm:$0xff] %vm280, %v278
    %288 = vst.msk [vmem:[#allocation2 + $0x38] sm:$0xff] %vm280, %v279
    // Predicated region
    $region14: #{tpu_custom_call.1} parent=1 // pred_check
      %p289 = pneg %p56
    $region15: #{tpu_custom_call.1} parent=1 // pred_check_branch
      %291 = sbr.rel (%p289) target = $region17
    $region16: #{tpu_custom_call.1} parent=1 // pred_region
      %v292 = vld [vmem:[#allocation2] sm:$0xff]
      %v293 = vld [vmem:[#allocation2 + $0x8] sm:$0xff]
      %v294 = vld [vmem:[#allocation2 + $0x10] sm:$0xff]
      %v295 = vld [vmem:[#allocation2 + $0x18] sm:$0xff]
      %v296 = vld [vmem:[#allocation2 + $0x20] sm:$0xff]
      %v297 = vld [vmem:[#allocation2 + $0x28] sm:$0xff]
      %v298 = vld [vmem:[#allocation2 + $0x30] sm:$0xff]
      %v299 = vld [vmem:[#allocation2 + $0x38] sm:$0xff]
      %v300 = vsel %vm280, %v292, 0.0
      %v301 = vsel %vm280, %v293, 0.0
      %v302 = vadd.f32 %v300, %v301
      %v303 = vsel %vm280, %v294, 0.0
      %v304 = vadd.f32 %v302, %v303
      %v305 = vsel %vm280, %v295, 0.0
      %v306 = vadd.f32 %v304, %v305
      %v307 = vsel %vm280, %v296, 0.0
      %v308 = vadd.f32 %v306, %v307
      %v309 = vsel %vm280, %v297, 0.0
      %v310 = vadd.f32 %v308, %v309
      %v311 = vsel %vm280, %v298, 0.0
      %v312 = vadd.f32 %v310, %v311
      %v313 = vsel %vm280, %v299, 0.0
      %v314 = vadd.f32 %v312, %v313
      %315 = vadd.xlane.f32.xlu0 %v314
      %v316 = vpop.xlane.xlu0 %315
      %v317 = vrot.slane %v316, 4
      %v318 = vadd.f32 %v316, %v317
      %v319 = vrot.slane %v318, 2
      %v320 = vadd.f32 %v318, %v319
      %v321 = vrot.slane %v320, 1
      %v322 = vadd.f32 %v320, %v321
      %s323 = vtos %v322
      %v324 = vstv %s323
      %v325 = vadd.f32 %v324, 0.0
      %326 = vst [vmem:[#allocation3] sm:$0xff] %v325
    $region17: #{tpu_custom_call.1} parent=1 // pred_fallthru
      _
    // Predicated region
    $region18: #{tpu_custom_call.1} parent=1 // pred_check
      _
    $region19: #{tpu_custom_call.1} parent=1 // pred_check_branch
      %328 = sbr.rel (0) target = $region21
    $region20: #{tpu_custom_call.1} parent=1 // pred_region
      %s330 = ssub.s32 128, 128
      %331 = vsyncadd [#allocation4], %s330
      %s333 = sshll.u32 [#allocation3], 4
      %s334 = int_to_ptr.vmem [resolvable:$true] %s333
      %336 = dma.vmem_to_hbm [thread:$0]  %s334, 128, %s2, [#allocation4]
    $region21: #{tpu_custom_call.1} parent=1 // pred_fallthru
      _
    // Predicated region
    $region22: #{tpu_custom_call.1} parent=1 // pred_check
      _
    $region23: #{tpu_custom_call.1} parent=1 // pred_check_branch
      %338 = sbr.rel (0) target = $region25
    $region24: #{tpu_custom_call.1} parent=1 // pred_region
      %339 = dma.done [#allocation4], 128
    $region25: #{tpu_custom_call.1} parent=1 // pred_fallthru
      _
    %340 = vsyncpa [#allocation4], 1

</llo_original>
